<compile_context>
chip_gen: v5e
topology: v5e:2x2
jax: 0.10.0
libtpu: 0.0.40
codegen_flags: <defaults>
</compile_context>

<pallas_src>
import math

import jax
import jax.numpy as jnp
from jax.experimental import pallas as pl
from jax.experimental.pallas import tpu as pltpu


_TARGET_TILE_BYTES = 4 * 1024 * 1024   # ~4 MiB per buffer (per perf review)


def make_pe(max_len: int, d_model: int, dtype=jnp.float32) -> jnp.ndarray:
    """Sinusoidal positional-encoding table, shape (1, max_len, d_model)."""
    assert d_model % 2 == 0, "sinusoidal PE requires even d_model (as in the PyTorch module)"
    position = jnp.arange(0, max_len, dtype=jnp.float32)[:, None]              # (L, 1)
    div_term = jnp.exp(
        jnp.arange(0, d_model, 2, dtype=jnp.float32) * (-math.log(10000.0) / d_model)
    )                                                                          # (D/2,)
    angles = position * div_term                                               # (L, D/2)
    pe = jnp.zeros((max_len, d_model), dtype=jnp.float32)
    pe = pe.at[:, 0::2].set(jnp.sin(angles))
    pe = pe.at[:, 1::2].set(jnp.cos(angles))
    return pe[None, :, :].astype(dtype)                                        # (1, L, D)


def _add_pe_kernel(x_ref, pe_ref, o_ref):
    # x_ref / pe_ref / o_ref: (tile_s, D) tiles of identical dtype.
    # Pure per-vreg VPU add; no broadcast, no relayout.
    o_ref[...] = x_ref[...] + pe_ref[...]


def _pick_tile_rows(S: int, D: int, itemsize: int) -> int:
    """Rows per tile: ~4 MiB per buffer, multiple of the sublane pack, divisor of S if possible."""
    pack = max(8, 32 // itemsize)                                   # 8 (4B) / 16 (2B) / 32 (1B)
    cap = max(pack, (_TARGET_TILE_BYTES // max(1, D * itemsize)) // pack * pack)
    if S <= cap:
        return S                                                    # full extent: always legal
    t = cap
    while t >= pack:                                                # prefer a divisor of S
        if S % t == 0:                                              # -> no partial last tile
            return t
        t -= pack
    return cap                                                      # partial last tile (masked)


def positional_encoding(x: jnp.ndarray, pe_full: jnp.ndarray) -> jnp.ndarray:
    """x: (B, S, D); pe_full: (1, max_len, D). Returns x + pe[:, :S, :]."""
    B, S, D = x.shape
    max_len = pe_full.shape[1]
    assert S <= max_len, f"sequence length {S} exceeds positional-encoding max_len {max_len}"
    assert pe_full.shape[2] == D, "d_model mismatch between x and pe table"

    pe = pe_full[0, :S, :].astype(x.dtype)      # (S, D): static slice + dtype match (glue-side)

    itemsize = jnp.dtype(x.dtype).itemsize
    tile_s = _pick_tile_rows(S, D, itemsize)
    grid_s = pl.cdiv(S, tile_s)

    cost = pl.CostEstimate(
        flops=B * S * D,
        transcendentals=0,
        bytes_accessed=(2 * B * S * D + S * D) * itemsize,          # read x, write out, read pe once
    )

    return pl.pallas_call(
        _add_pe_kernel,
        out_shape=jax.ShapeDtypeStruct((B, S, D), x.dtype),
        grid_spec=pltpu.PrefetchScalarGridSpec(
            num_scalar_prefetch=0,
            # Row-tile axis leads (v7x megacore shards by rows, not by small B); batch is
            # innermost so pe's block index is constant across b and it is not re-DMA'd.
            grid=(grid_s, B),
            in_specs=[
                pl.BlockSpec((pl.Squeezed(), tile_s, D), lambda r, b: (b, r, 0)),   # x
                pl.BlockSpec((tile_s, D), lambda r, b: (r, 0)),                     # pe
            ],
            out_specs=pl.BlockSpec((pl.Squeezed(), tile_s, D), lambda r, b: (b, r, 0)),
        ),
        compiler_params=pltpu.CompilerParams(
            dimension_semantics=("parallel", "parallel"),   # independent tiles
            vmem_limit_bytes=32 * 1024 * 1024,              # safe on v7x (64 MiB physical)
        ),
        cost_estimate=cost,
    )(x, pe)


if __name__ == "__main__":
    # Small shapes consistent with the module (module sets d_model = 512).
    B, S, D = 2, 8, 512
    MAX_LEN = 64

    key = jax.random.PRNGKey(0)
    x = jax.random.normal(key, (B, S, D), dtype=jnp.float32)

    pe_full = make_pe(MAX_LEN, D, dtype=jnp.float32)

    out = positional_encoding(x, pe_full)
    out = jax.block_until_ready(out)

    # Reference check (pure JAX), same semantics as the PyTorch forward.
    ref = x + pe_full[:, :S, :]
    assert out.shape == (B, S, D)
    assert out.dtype == x.dtype
    assert jnp.allclose(out, ref, atol=1e-6), "mismatch vs reference"

    print("KERNEL_OK")
</pallas_src>

<mosaic_0001>
module attributes {stable_mosaic.version = 11 : i64} {
  func.func @_add_pe_kernel(%arg0: i32, %arg1: i32, %arg2: memref<1x8x512xf32, #tpu.memory_space<vmem>>, %arg3: memref<8x512xf32, #tpu.memory_space<vmem>>, %arg4: memref<1x8x512xf32, #tpu.memory_space<vmem>>) attributes {dimension_semantics = [#tpu.dimension_semantics<parallel>, #tpu.dimension_semantics<parallel>], iteration_bounds = array<i64: 1, 2>, scalar_prefetch = 0 : i64, scratch_operands = 0 : i64, tpu.core_type = #tpu.core_type<tc>, window_params = [{transform_indices = @transform_0, window_bounds = array<i64: 1, 8, 512>}, {transform_indices = @transform_1, window_bounds = array<i64: 8, 512>}, {transform_indices = @transform_2, window_bounds = array<i64: 1, 8, 512>}]} {
    %c0 = arith.constant 0 : index
    %c0_0 = arith.constant 0 : index
    %c0_1 = arith.constant 0 : index
    %0 = vector.load %arg2[%c0, %c0_0, %c0_1] : memref<1x8x512xf32, #tpu.memory_space<vmem>>, vector<1x8x512xf32>
    %1 = vector.shape_cast %0 : vector<1x8x512xf32> to vector<8x512xf32>
    %c0_2 = arith.constant 0 : index
    %c0_3 = arith.constant 0 : index
    %2 = vector.load %arg3[%c0_2, %c0_3] : memref<8x512xf32, #tpu.memory_space<vmem>>, vector<8x512xf32>
    %3 = arith.addf %1, %2 : vector<8x512xf32>
    %c0_4 = arith.constant 0 : index
    %c0_5 = arith.constant 0 : index
    %c0_6 = arith.constant 0 : index
    %4 = vector.load %arg4[%c0_4, %c0_5, %c0_6] : memref<1x8x512xf32, #tpu.memory_space<vmem>>, vector<1x8x512xf32>
    %5 = vector.shape_cast %4 : vector<1x8x512xf32> to vector<8x512xf32>
    %6 = vector.shape_cast %3 : vector<8x512xf32> to vector<1x8x512xf32>
    tpu.vector_store %arg4[%c0_4, %c0_5, %c0_6], %6 {strides = array<i32>} : memref<1x8x512xf32, #tpu.memory_space<vmem>>, vector<1x8x512xf32>,
    return
  }
  func.func @transform_0(%arg0: i32, %arg1: i32) -> (i32, i32, i32) {
    %c0_i32 = arith.constant 0 : i32
    %c0_i32_0 = arith.constant 0 : i32
    return %arg1, %arg0, %c0_i32 : i32, i32, i32
  }
  func.func @transform_1(%arg0: i32, %arg1: i32) -> (i32, i32) {
    %c0_i32 = arith.constant 0 : i32
    %c0_i32_0 = arith.constant 0 : i32
    return %arg0, %c0_i32 : i32, i32
  }
  func.func @transform_2(%arg0: i32, %arg1: i32) -> (i32, i32, i32) {
    %c0_i32 = arith.constant 0 : i32
    %c0_i32_0 = arith.constant 0 : i32
    return %arg1, %arg0, %c0_i32 : i32, i32, i32
  }
}

</mosaic_0001>

<llo_original>
// kernel: tpu_custom_call.1
$region0: #{tpu_custom_call.1}
  #allocation0 [shape = 'u32[]', space=smem, size = 0x4, offset = 0x4, fixed_abs, tag = 'smem constant byte address 0x4 - core index']
  #allocation1 [shape = 'u32[72,128]{1,0:T(1,128)}', space=vmem, size = 0x9000, scoped, tag = 'internal scratch']
  %s0 = inlined_call_operand.hbm [shape: f32[2,8,512], index: 0, kind: input, shape index: {}]
  %s1 = inlined_call_operand.hbm [shape: f32[8,512], index: 1, kind: input, shape index: {}]
  %s2 = inlined_call_operand.hbm [shape: f32[2,8,512], index: 2, kind: output, shape index: {}]
  %s3 = sld [smem:[#allocation0]]
  $region49: #{tpu_custom_call.1} parent=0
    _
  %s5 = ssub.s32 1, %s3
  %s6 = scalar_select 0, %s5, %s3
  $region1: #{tpu_custom_call.1} parent=0
    #allocation2 [shape = 'u8[32768]{0}', space=vmem, size = 0x8000, scoped, tag = 'input window, operand 0']
    #allocation3 [shape = 's32[2]{0}', space=sflag, size = 0x8, scoped, tag = 'scoped memory for tpu_custom_call.1']
    #allocation4 [shape = 's32[2]{0}', space=sflag, size = 0x8, scoped, tag = 'scoped memory for tpu_custom_call.1']
    #allocation5 [shape = 'u8[16384]{0}', space=vmem, size = 0x4000, scoped, tag = 'input window, operand 1, single buffered']
    #allocation6 [shape = 's32[1]{0}', space=sflag, size = 0x4, scoped, tag = 'scoped memory for tpu_custom_call.1']
    #allocation7 [shape = 'u8[32768]{0}', space=vmem, size = 0x8000, scoped, tag = 'output window, operand 0']
    %7 = vsyncpa [#allocation3], 0
    %s8 = scalar_lea.sflag [#allocation3], 1
    %9 = vsyncpa %s8, 0
    %10 = vsyncpa [#allocation6], 0
    %11 = vsyncpa [#allocation4], 0
    %s12 = scalar_lea.sflag [#allocation4], 1
    %13 = vsyncpa %s12, 0
    loop: start=0, step=1, limit=4
    $region2: #{tpu_custom_call.1} parent=1 // loop_pre_header
      _
    $region3: #{tpu_custom_call.1} parent=1 // loop_header
      %s15 = sphi 0, %s19
      %p16 = scmp.ge.s32.totalorder %s15, 4
      %s22 = sphi 0, %s34
      %s23 = sphi 0, %s30
      %s24 = sphi 0, %s22
      %s25 = sphi 0, %s23
      %s26 = sphi 0, %s24
      %s27 = sphi 0, %s25
      %s39 = sphi 0, %s41
      %s42 = sphi 0, %s39
      %s43 = sphi 0, %s42
      %s59 = sphi 0, %s43
      %s65 = sphi 0, %s67
      %s68 = sphi 0, %s65
      %s69 = sphi 0, %s68
      %s85 = sphi 0, %s69
      %s93 = sphi 0, %s95
      %s96 = sphi 0, %s93
      %s97 = sphi 0, %s96
      %s113 = sphi 0, %s97
    $region4: #{tpu_custom_call.1} parent=1 // loop_header_branch
      %18 = sbr.rel (%p16) target = $region8
    $region5: #{tpu_custom_call.1} parent=1 // loop_body
      %s20 = ssub.s32 %s15, 1
      %s21 = ssub.s32 %s15, 2
      %s28 = sadd.s32 1, %s23
      %p29 = scmp.ge.s32.totalorder %s28, 2
      %s30 = scalar_select %p29, 0, %s28
      %s31 = sadd.s32 1, %s22
      %s32 = scalar_select %p29, %s31, %s22
      %p33 = scmp.ge.s32.totalorder %s32, 1
      %s34 = scalar_select %p33, 0, %s32
      %s35 = ssub.s32 %s23, %s30
      %s36 = ssub.s32 %s22, %s34
      %s37 = sor.u32 %s35, %s36
      %p38 = scmp.eq.s32.totalorder %s37, 0
      %s40 = sadd.s32 %s39, 1
      %s41 = scalar_select %p38, %s39, %s40
      %p44 = pneg %p38
      %p45 = scmp.eq.s32.totalorder %s15, 1
      %p46 = por %p44, %p45
      %p47 = scmp.ne.s32.totalorder %s39, %s42
      %p48 = scmp.eq.s32.totalorder %s15, 0
      %p49 = por %p47, %p48
      %p50 = scmp.ne.s32.totalorder %s39, %s42
      %p51 = scmp.eq.s32.totalorder %s20, 1
      %p52 = por %p50, %p51
      %p53 = scmp.ne.s32.totalorder %s42, %s43
      %p54 = scmp.eq.s32.totalorder %s20, 0
      %p55 = por %p53, %p54
      %p56 = scmp.ne.s32.totalorder %s42, %s43
      %p57 = scmp.eq.s32.totalorder %s21, 1
      %p58 = por %p56, %p57
      %p60 = scmp.ne.s32.totalorder %s43, %s59
      %p61 = scmp.eq.s32.totalorder %s21, 0
      %p62 = por %p60, %p61
      %s63 = ssub.s32 %s22, %s34
      %p64 = scmp.eq.s32.totalorder %s63, 0
      %s66 = sadd.s32 %s65, 1
      %s67 = scalar_select %p64, %s65, %s66
      %p70 = pneg %p64
      %p71 = scmp.eq.s32.totalorder %s15, 1
      %p72 = por %p70, %p71
      %p73 = scmp.ne.s32.totalorder %s65, %s68
      %p74 = scmp.eq.s32.totalorder %s15, 0
      %p75 = por %p73, %p74
      %p76 = scmp.ne.s32.totalorder %s65, %s68
      %p77 = scmp.eq.s32.totalorder %s20, 1
      %p78 = por %p76, %p77
      %p79 = scmp.ne.s32.totalorder %s68, %s69
      %p80 = scmp.eq.s32.totalorder %s20, 0
      %p81 = por %p79, %p80
      %p82 = scmp.ne.s32.totalorder %s68, %s69
      %p83 = scmp.eq.s32.totalorder %s21, 1
      %p84 = por %p82, %p83
      %p86 = scmp.ne.s32.totalorder %s69, %s85
      %p87 = scmp.eq.s32.totalorder %s21, 0
      %p88 = por %p86, %p87
      %s89 = ssub.s32 %s23, %s30
      %s90 = ssub.s32 %s22, %s34
      %s91 = sor.u32 %s89, %s90
      %p92 = scmp.eq.s32.totalorder %s91, 0
      %s94 = sadd.s32 %s93, 1
      %s95 = scalar_select %p92, %s93, %s94
      %p98 = pneg %p92
      %p99 = scmp.eq.s32.totalorder %s15, 1
      %p100 = por %p98, %p99
      %p101 = scmp.ne.s32.totalorder %s93, %s96
      %p102 = scmp.eq.s32.totalorder %s15, 0
      %p103 = por %p101, %p102
      %p104 = scmp.ne.s32.totalorder %s93, %s96
      %p105 = scmp.eq.s32.totalorder %s20, 1
      %p106 = por %p104, %p105
      %p107 = scmp.ne.s32.totalorder %s96, %s97
      %p108 = scmp.eq.s32.totalorder %s20, 0
      %p109 = por %p107, %p108
      %p110 = scmp.ne.s32.totalorder %s96, %s97
      %p111 = scmp.eq.s32.totalorder %s21, 1
      %p112 = por %p110, %p111
      %p114 = scmp.ne.s32.totalorder %s97, %s113
      %p115 = scmp.eq.s32.totalorder %s21, 0
      %p116 = por %p114, %p115
      %p117 = scmp.le.s32.totalorder 1, %s15
      %p118 = scmp.lt.s32.totalorder %s15, 3
      %p119 = pnand %p117, %p118
      %p120 = pneg %p119
      // Predicated region
      $region9: #{tpu_custom_call.1} parent=5 // pred_check
        _
      $region10: #{tpu_custom_call.1} parent=5 // pred_check_branch
        %122 = sbr.rel (%p119) target = $region12
      $region11: #{tpu_custom_call.1} parent=5 // pred_region
        %s123 = ssub.s32 %s15, 1
        // Predicated region
        $region13: #{tpu_custom_call.1} parent=11 // pred_check
          %p124 = pneg %p81
        $region14: #{tpu_custom_call.1} parent=11 // pred_check_branch
          %126 = sbr.rel (%p124) target = $region16
        $region15: #{tpu_custom_call.1} parent=11 // pred_region
          %128 = vsyncadd [#allocation6], 0
          %s129 = smul.addr %s24, 4
          %s130 = smul.addr %s129, 8
          %s131 = scalar_lea.hbm %s1, %s130
          %s133 = sshll.u32 %s131, 4
          %s134 = int_to_ptr.hbm [resolvable:$true] %s133
          %s135 = sshll.u32 [#allocation5], 4
          %s136 = int_to_ptr.vmem [resolvable:$true] %s135
          %138 = dma.hbm_to_vmem [thread:$0]  %s134, 512, %s136, [#allocation6]
        $region16: #{tpu_custom_call.1} parent=11 // pred_fallthru
          _
      $region12: #{tpu_custom_call.1} parent=5 // pred_fallthru
        _
      %p139 = scmp.lt.s32.totalorder %s15, 2
      // Predicated region
      $region17: #{tpu_custom_call.1} parent=5 // pred_check
        %p140 = pneg %p139
      $region18: #{tpu_custom_call.1} parent=5 // pred_check_branch
        %142 = sbr.rel (%p140) target = $region20
      $region19: #{tpu_custom_call.1} parent=5 // pred_region
        // Predicated region
        $region21: #{tpu_custom_call.1} parent=19 // pred_check
          %p143 = pneg %p49
        $region22: #{tpu_custom_call.1} parent=19 // pred_check_branch
          %145 = sbr.rel (%p143) target = $region24
        $region23: #{tpu_custom_call.1} parent=19 // pred_region
          %s146 = sand.u32 %s39, 1
          %s147 = scalar_lea.sflag [#allocation3], %s146
          %s148 = sand.u32 %s39, 1
          %s149 = smul.addr %s148, 32
          %s150 = scalar_lea.vmem [#allocation2], %s149
          %152 = vsyncadd %s147, 0
          %s153 = smul.addr %s22, 4
          %s154 = smul.addr %s23, 4
          %s155 = sadd.s32 %s153, %s154
          %s156 = smul.addr %s155, 8
          %s157 = scalar_lea.hbm %s0, %s156
          %s159 = sshll.u32 %s157, 4
          %s160 = int_to_ptr.hbm [resolvable:$true] %s159
          %s161 = sshll.u32 %s150, 4
          %s162 = int_to_ptr.vmem [resolvable:$true] %s161
          %164 = dma.hbm_to_vmem [thread:$0]  %s160, 512, %s162, %s147
        $region24: #{tpu_custom_call.1} parent=19 // pred_fallthru
          _
      $region20: #{tpu_custom_call.1} parent=5 // pred_fallthru
        _
      %p165 = scmp.le.s32.totalorder 1, %s15
      %p166 = scmp.lt.s32.totalorder %s15, 3
      %p167 = pnand %p165, %p166
      %p168 = pneg %p167
      // Predicated region
      $region25: #{tpu_custom_call.1} parent=5 // pred_check
        _
      $region26: #{tpu_custom_call.1} parent=5 // pred_check_branch
        %170 = sbr.rel (%p167) target = $region28
      $region27: #{tpu_custom_call.1} parent=5 // pred_region
        %s171 = ssub.s32 %s15, 1
        %s172 = sand.u32 %s42, 1
        %s173 = scalar_lea.sflag [#allocation3], %s172
        %s174 = sand.u32 %s42, 1
        %s175 = smul.addr %s174, 32
        %s176 = scalar_lea.vmem [#allocation2], %s175
        // Predicated region
        $region29: #{tpu_custom_call.1} parent=27 // pred_check
          %p177 = pneg %p55
        $region30: #{tpu_custom_call.1} parent=27 // pred_check_branch
          %179 = sbr.rel (%p177) target = $region32
        $region31: #{tpu_custom_call.1} parent=27 // pred_region
          %181 = dma.done %s173, 512
        $region32: #{tpu_custom_call.1} parent=27 // pred_fallthru
          _
        // Predicated region
        $region33: #{tpu_custom_call.1} parent=27 // pred_check
          %p182 = pneg %p81
        $region34: #{tpu_custom_call.1} parent=27 // pred_check_branch
          %184 = sbr.rel (%p182) target = $region36
        $region35: #{tpu_custom_call.1} parent=27 // pred_region
          %186 = dma.done [#allocation6], 512
        $region36: #{tpu_custom_call.1} parent=27 // pred_fallthru
          _
        %s187 = sand.u32 %s42, 1
        %s188 = scalar_lea.sflag [#allocation3], %s187
        %s189 = sand.u32 %s42, 1
        %s190 = smul.addr %s189, 32
        %s191 = scalar_lea.vmem [#allocation2], %s190
        %p192 = pneg %p55
        %p193 = pneg %p52
        %p194 = pneg %p81
        %p195 = pneg %p78
        %p196 = pneg %p109
        %p197 = pneg %p106
        %s198 = sand.u32 %s96, 1
        %s199 = scalar_lea.sflag [#allocation4], %s198
        %s200 = sand.u32 %s96, 1
        %s201 = smul.addr %s200, 32
        %s202 = scalar_lea.vmem [#allocation7], %s201
        %v203 = vld [vmem:[%s176] sm:$0xff]
        %v204 = vld [vmem:[%s176 + $0x8] sm:$0xff]
        %v205 = vld [vmem:[%s176 + $0x10] sm:$0xff]
        %v206 = vld [vmem:[%s176 + $0x18] sm:$0xff]
        %v207 = vld [vmem:[#allocation5] sm:$0xff]
        %v208 = vld [vmem:[#allocation5 + $0x8] sm:$0xff]
        %v209 = vld [vmem:[#allocation5 + $0x10] sm:$0xff]
        %v210 = vld [vmem:[#allocation5 + $0x18] sm:$0xff]
        %v211 = vadd.f32 %v203, %v207
        %v212 = vadd.f32 %v204, %v208
        %v213 = vadd.f32 %v205, %v209
        %v214 = vadd.f32 %v206, %v210
        %215 = vst [vmem:[%s202] sm:$0xff] %v211
        %216 = vst [vmem:[%s202 + $0x8] sm:$0xff] %v212
        %217 = vst [vmem:[%s202 + $0x10] sm:$0xff] %v213
        %218 = vst [vmem:[%s202 + $0x18] sm:$0xff] %v214
        %s219 = sand.u32 %s96, 1
        %s220 = scalar_lea.sflag [#allocation4], %s219
        %s221 = sand.u32 %s96, 1
        %s222 = smul.addr %s221, 32
        %s223 = scalar_lea.vmem [#allocation7], %s222
        // Predicated region
        $region37: #{tpu_custom_call.1} parent=27 // pred_check
          %p224 = pneg %p106
        $region38: #{tpu_custom_call.1} parent=27 // pred_check_branch
          %226 = sbr.rel (%p224) target = $region40
        $region39: #{tpu_custom_call.1} parent=27 // pred_region
          %228 = vsyncadd %s220, 0
          %s229 = smul.addr %s24, 4
          %s230 = smul.addr %s25, 4
          %s231 = sadd.s32 %s229, %s230
          %s232 = smul.addr %s231, 8
          %s233 = scalar_lea.hbm %s2, %s232
          %s235 = sshll.u32 %s223, 4
          %s236 = int_to_ptr.vmem [resolvable:$true] %s235
          %s237 = sshll.u32 %s233, 4
          %s238 = int_to_ptr.hbm [resolvable:$true] %s237
          %240 = dma.vmem_to_hbm [thread:$0]  %s236, 512, %s238, %s220
        $region40: #{tpu_custom_call.1} parent=27 // pred_fallthru
          _
      $region28: #{tpu_custom_call.1} parent=5 // pred_fallthru
        _
      %p241 = scmp.le.s32.totalorder 2, %s15
      // Predicated region
      $region41: #{tpu_custom_call.1} parent=5 // pred_check
        %p242 = pneg %p241
      $region42: #{tpu_custom_call.1} parent=5 // pred_check_branch
        %244 = sbr.rel (%p242) target = $region44
      $region43: #{tpu_custom_call.1} parent=5 // pred_region
        %s245 = ssub.s32 %s15, 2
        // Predicated region
        $region45: #{tpu_custom_call.1} parent=43 // pred_check
          %p246 = pneg %p112
        $region46: #{tpu_custom_call.1} parent=43 // pred_check_branch
          %248 = sbr.rel (%p246) target = $region48
        $region47: #{tpu_custom_call.1} parent=43 // pred_region
          %s249 = sand.u32 %s97, 1
          %s250 = scalar_lea.sflag [#allocation4], %s249
          %s251 = sand.u32 %s97, 1
          %s252 = smul.addr %s251, 32
          %s253 = scalar_lea.vmem [#allocation7], %s252
          %255 = dma.done %s250, 512
        $region48: #{tpu_custom_call.1} parent=43 // pred_fallthru
          _
      $region44: #{tpu_custom_call.1} parent=5 // pred_fallthru
        _
    $region6: #{tpu_custom_call.1} parent=1 // loop_footer
      %s19 = sadd.s32 1, %s15
    $region7: #{tpu_custom_call.1} parent=1 // loop_footer_branch
      %14 = sbr.rel target = $region3
    $region8: #{tpu_custom_call.1} parent=1 // loop_exit
      _
    %256 = vsyncpa [#allocation3], 1
    %s257 = scalar_lea.sflag [#allocation3], 1
    %258 = vsyncpa %s257, 1
    %259 = vsyncpa [#allocation6], 1
    %260 = vsyncpa [#allocation4], 1
    %s261 = scalar_lea.sflag [#allocation4], 1
    %262 = vsyncpa %s261, 1

</llo_original>
